<compile_context>
chip_gen: v6e
topology: v6e:2x2x1
jax: 0.10.0
libtpu: 0.0.40
codegen_flags: <defaults>
</compile_context>

<pallas_src>
import functools

import jax
import jax.numpy as jnp
from jax.experimental import pallas as pl
from jax.experimental.pallas import tpu as pltpu

SMOOTH = 1e-4
ALPHA = 0.0   # default alpha=0 -> (1-x)**0 * x == x (dead branch below)


def _physical_vmem_bytes() -> int:
    """Per-core physical VMEM (trace-time query, conservative fallback)."""
    try:
        info = pltpu.get_tpu_info()
        for attr in ("vmem_capacity_bytes", "vmem_bytes", "vmem_size_bytes"):
            val = getattr(info, attr, None)
            if val:
                return int(val)
    except Exception:
        pass
    return 64 * 1024 * 1024   # v7x physical (smallest of the three generations)


def _dice_partial_kernel(x_ref, t_ref, sx_ref, st_ref, si_ref, *,
                         n_tokens, tile_n, tiles_per_chunk):
    k = pl.program_id(0)          # chunk (megacore-parallel axis on v7x)
    i = pl.program_id(1)          # tile within the chunk (sequential / "arbitrary")

    # Per-chunk partial-sum output blocks stay VMEM-resident across the inner axis.
    @pl.when(i == 0)
    def _init():
        sx_ref[...] = jnp.zeros_like(sx_ref)
        st_ref[...] = jnp.zeros_like(st_ref)
        si_ref[...] = jnp.zeros_like(si_ref)

    x = x_ref[...].astype(jnp.float32)                       # (C, TILE_N)
    if ALPHA != 0.0:  # compile-time constant branch; dead for default alpha=0.0
        x = ((1.0 - x) ** ALPHA) * x
    t = t_ref[...]                                           # (1, TILE_N) int32
    c, tn = x.shape
    class_ids = jax.lax.broadcasted_iota(jnp.int32, (c, tn), 0)

    def accumulate(match, xv):
        # match: (C, TILE_N) bool; xv: (C, TILE_N) f32 (already zeroed on the tail path)
        onehot = jnp.where(match, 1.0, 0.0)
        sx_ref[...] += jnp.sum(xv, axis=1, keepdims=True)[None]
        st_ref[...] += jnp.sum(onehot, axis=1, keepdims=True)[None]
        si_ref[...] += jnp.sum(jnp.where(match, xv, 0.0), axis=1, keepdims=True)[None]

    tile_start = (k * tiles_per_chunk + i) * tile_n
    is_tail = tile_start + tile_n > n_tokens

    @pl.when(jnp.logical_not(is_tail))
    def _steady():                       # hot path: no masking ops at all
        accumulate(class_ids == t, x)

    @pl.when(is_tail)
    def _tail():                         # only tiles that overrun N pay for masking
        col = jax.lax.broadcasted_iota(jnp.int32, (1, tn), 1) + tile_start
        valid = col < n_tokens
        accumulate(jnp.logical_and(class_ids == t, valid), jnp.where(valid, x, 0.0))


@functools.partial(jax.jit, static_argnames=("tile_n", "n_chunks"))
def dice_loss_cn(inputs_cn, target, *, tile_n=None, n_chunks=2):
    """Mean dice loss from lane-dense probabilities.

    inputs_cn: (C, N) probabilities (f32 or bf16) -- preferred layout; have the producer
               (e.g. the preceding softmax) emit it directly so no transpose pass is needed.
    target:    (N,) int class ids in [0, C).
    """
    c, n = inputs_cn.shape
    x_itemsize = jnp.dtype(inputs_cn.dtype).itemsize

    phys_vmem = _physical_vmem_bytes()
    vmem_cap = min(int(phys_vmem * 0.7), 96 * 1024 * 1024)   # headroom on every generation

    if tile_n is None:
        # ~4 MiB of x per grid step: DMA time >> fixed per-step overhead, while the
        # double-buffered working set stays well inside every chip's VMEM.
        tile_bytes = min(4 * 1024 * 1024, vmem_cap // 4)
        tile_n = min(65536, max(512, tile_bytes // (c * x_itemsize)))
    tile_n = max(128, (int(tile_n) // 128) * 128)
    if n <= tile_n:
        tile_n = n                       # single block == full array (any N allowed)

    num_tiles = pl.cdiv(n, tile_n)
    n_chunks = max(1, min(int(n_chunks), num_tiles))
    tiles_per_chunk = pl.cdiv(num_tiles, n_chunks)

    # If the rectangular (n_chunks, tiles_per_chunk) grid overshoots the real tile count,
    # clamp the block index (the kernel fully masks such tiles via their token offset).
    if n_chunks * tiles_per_chunk > num_tiles:
        last = num_tiles - 1
        blk = lambda k, i: jnp.minimum(k * tiles_per_chunk + i, last)
    else:
        blk = lambda k, i: k * tiles_per_chunk + i

    in_bytes = tile_n * (c * x_itemsize + 4)            # one x tile + one target tile
    vmem_limit = int(min(vmem_cap, max(16 * 1024 * 1024, 3 * in_bytes)))

    kernel = functools.partial(_dice_partial_kernel, n_tokens=n, tile_n=tile_n,
                               tiles_per_chunk=tiles_per_chunk)
    part_shape = jax.ShapeDtypeStruct((n_chunks, c, 1), jnp.float32)
    out_spec = pl.BlockSpec((1, c, 1), lambda k, i: (k, 0, 0))

    px, pt, pi = pl.pallas_call(
        kernel,
        out_shape=(part_shape, part_shape, part_shape),
        grid_spec=pltpu.PrefetchScalarGridSpec(
            num_scalar_prefetch=0,
            grid=(n_chunks, tiles_per_chunk),
            in_specs=[
                # NOTE: default 2-deep buffering hides the DMA at these tile sizes; switch to
                # pipeline_mode=pl.Buffered(3) only if an xprof trace shows exposed DMA.
                pl.BlockSpec((c, tile_n), lambda k, i: (0, blk(k, i))),   # x tile (C x tokens)
                pl.BlockSpec((1, tile_n), lambda k, i: (0, blk(k, i))),   # target tile
            ],
            out_specs=(out_spec, out_spec, out_spec),
        ),
        compiler_params=pltpu.CompilerParams(
            dimension_semantics=("parallel", "arbitrary"),   # chunk axis -> v7x megacore split
            vmem_limit_bytes=vmem_limit,
        ),
    )(inputs_cn, target.astype(jnp.int32).reshape(1, n))

    # Tiny C-wide combine (per-chunk / per-core partial sums -> scalar loss) in the wrapper.
    sx = jnp.sum(px, axis=(0, 2))
    st = jnp.sum(pt, axis=(0, 2))
    si = jnp.sum(pi, axis=(0, 2))
    denom = sx + st + jnp.float32(SMOOTH)
    numer = 2.0 * si + jnp.float32(n * SMOOTH)
    return jnp.float32(c) - jnp.sum(numer / denom) / jnp.float32(n)


@functools.partial(jax.jit, static_argnames=("tile_n", "n_chunks"))
def dice_loss(inputs, target, *, tile_n=None, n_chunks=2):
    """Module-faithful entry: inputs (N, C) probabilities, target (N,) int ids.

    NOTE: the (N, C) -> (C, N) transpose here is one extra HBM read+write pass; prefer
    `dice_loss_cn` with the producer emitting the lane-dense (C, N) layout directly.
    """
    return dice_loss_cn(inputs.T, target, tile_n=tile_n, n_chunks=n_chunks)


def _dice_loss_reference(inputs_nc, target):
    """Straightforward JAX port of the torch default path (per-element form)."""
    n, c = inputs_nc.shape
    x = inputs_nc.astype(jnp.float32)
    onehot = jax.nn.one_hot(target, c, dtype=jnp.float32)
    loss = jnp.zeros((n,), jnp.float32)
    for label_idx in range(c):
        xi = x[:, label_idx]
        ti = onehot[:, label_idx]
        loss = loss + (1.0 - (2.0 * xi * ti + SMOOTH) / (xi.sum() + ti.sum() + SMOOTH))
    return loss.mean()


if __name__ == "__main__":
    key = jax.random.PRNGKey(0)
    k1, k2 = jax.random.split(key)
    N, C = 421, 15   # FeedbackPrize default logits_size=15; N not a multiple of 8/128
    logits = jax.random.normal(k1, (N, C), dtype=jnp.float32)
    target = jax.random.randint(k2, (N,), 0, C, dtype=jnp.int32)

    # with_logits=False: the module expects probabilities.
    probs_nc = jax.nn.softmax(logits, axis=-1)          # module layout (N, C)
    probs_cn = jax.nn.softmax(logits.T, axis=0)         # producer emits lane-dense (C, N)

    ref = _dice_loss_reference(probs_nc, target)

    out_cn = jax.block_until_ready(dice_loss_cn(probs_cn, target))                 # 1 tile
    out_nc = jax.block_until_ready(dice_loss(probs_nc, target))                    # module-faithful entry
    out_tiled = jax.block_until_ready(dice_loss_cn(probs_cn, target, tile_n=128))  # 4 tiles x 2 chunks
    assert jnp.allclose(out_cn, ref, rtol=1e-5, atol=1e-4), (out_cn, ref)
    assert jnp.allclose(out_nc, ref, rtol=1e-5, atol=1e-4), (out_nc, ref)
    assert jnp.allclose(out_tiled, ref, rtol=1e-5, atol=1e-4), (out_tiled, ref)

    # Uneven chunk split (odd tile count -> clamped index map + fully masked overrun tile).
    N2 = 300
    ref2 = _dice_loss_reference(probs_nc[:N2], target[:N2])
    out2 = jax.block_until_ready(dice_loss_cn(probs_cn[:, :N2], target[:N2], tile_n=128))
    assert jnp.allclose(out2, ref2, rtol=1e-5, atol=1e-4), (out2, ref2)

    # bf16 activations stream at half the HBM bytes; accumulation stays f32 in-kernel.
    out_bf16 = jax.block_until_ready(dice_loss_cn(probs_cn.astype(jnp.bfloat16), target))
    assert jnp.allclose(out_bf16, ref, rtol=0.0, atol=2e-2), (out_bf16, ref)

    print("KERNEL_OK")
</pallas_src>

<mosaic_0001>
module attributes {stable_mosaic.version = 11 : i64} {
  func.func @_dice_partial_kernel(%arg0: i32, %arg1: i32, %arg2: memref<15x421xf32, #tpu.memory_space<vmem>>, %arg3: memref<1x421xi32, #tpu.memory_space<vmem>>, %arg4: memref<1x15x1xf32, #tpu.memory_space<vmem>>, %arg5: memref<1x15x1xf32, #tpu.memory_space<vmem>>, %arg6: memref<1x15x1xf32, #tpu.memory_space<vmem>>) attributes {dimension_semantics = [#tpu.dimension_semantics<parallel>, #tpu.dimension_semantics<arbitrary>], iteration_bounds = array<i64: 1, 1>, scalar_prefetch = 0 : i64, scratch_operands = 0 : i64, tpu.core_type = #tpu.core_type<tc>, window_params = [{transform_indices = @transform_0, window_bounds = array<i64: 15, 421>}, {transform_indices = @transform_1, window_bounds = array<i64: 1, 421>}, {transform_indices = @transform_2, window_bounds = array<i64: 1, 15, 1>}, {transform_indices = @transform_3, window_bounds = array<i64: 1, 15, 1>}, {transform_indices = @transform_4, window_bounds = array<i64: 1, 15, 1>}]} {
    %c0_i32 = arith.constant 0 : i32
    %0 = arith.cmpi eq, %arg1, %c0_i32 : i32
    %1 = arith.extui %0 : i1 to i32
    %c0_i32_0 = arith.constant 0 : i32
    %2 = arith.cmpi ne, %1, %c0_i32_0 : i32
    scf.if %2 {
      %cst = arith.constant 0.000000e+00 : f32
      %16 = vector.broadcast %cst : f32 to vector<1x15x1xf32>
      %c0_8 = arith.constant 0 : index
      %c0_9 = arith.constant 0 : index
      %c0_10 = arith.constant 0 : index
      %17 = vector.load %arg4[%c0_8, %c0_9, %c0_10] : memref<1x15x1xf32, #tpu.memory_space<vmem>>, vector<1x15x1xf32>
      tpu.vector_store %arg4[%c0_8, %c0_9, %c0_10], %16 {strides = array<i32>} : memref<1x15x1xf32, #tpu.memory_space<vmem>>, vector<1x15x1xf32>,
      %cst_11 = arith.constant 0.000000e+00 : f32
      %18 = vector.broadcast %cst_11 : f32 to vector<1x15x1xf32>
      %c0_12 = arith.constant 0 : index
      %c0_13 = arith.constant 0 : index
      %c0_14 = arith.constant 0 : index
      %19 = vector.load %arg5[%c0_12, %c0_13, %c0_14] : memref<1x15x1xf32, #tpu.memory_space<vmem>>, vector<1x15x1xf32>
      tpu.vector_store %arg5[%c0_12, %c0_13, %c0_14], %18 {strides = array<i32>} : memref<1x15x1xf32, #tpu.memory_space<vmem>>, vector<1x15x1xf32>,
      %cst_15 = arith.constant 0.000000e+00 : f32
      %20 = vector.broadcast %cst_15 : f32 to vector<1x15x1xf32>
      %c0_16 = arith.constant 0 : index
      %c0_17 = arith.constant 0 : index
      %c0_18 = arith.constant 0 : index
      %21 = vector.load %arg6[%c0_16, %c0_17, %c0_18] : memref<1x15x1xf32, #tpu.memory_space<vmem>>, vector<1x15x1xf32>
      tpu.vector_store %arg6[%c0_16, %c0_17, %c0_18], %20 {strides = array<i32>} : memref<1x15x1xf32, #tpu.memory_space<vmem>>, vector<1x15x1xf32>,
    } else {
    }
    %c0 = arith.constant 0 : index
    %c0_1 = arith.constant 0 : index
    %3 = vector.load %arg2[%c0, %c0_1] : memref<15x421xf32, #tpu.memory_space<vmem>>, vector<15x421xf32>
    %c0_2 = arith.constant 0 : index
    %c0_3 = arith.constant 0 : index
    %4 = vector.load %arg3[%c0_2, %c0_3] : memref<1x421xi32, #tpu.memory_space<vmem>>, vector<1x421xi32>
    %5 = tpu.iota {dimensions = array<i32: 0>} : vector<15x421xi32>
    %c1_i32 = arith.constant 1 : i32
    %6 = arith.muli %arg0, %c1_i32 : i32
    %7 = arith.addi %6, %arg1 : i32
    %c421_i32 = arith.constant 421 : i32
    %8 = arith.muli %7, %c421_i32 : i32
    %c421_i32_4 = arith.constant 421 : i32
    %9 = arith.addi %8, %c421_i32_4 : i32
    %c421_i32_5 = arith.constant 421 : i32
    %10 = arith.cmpi sgt, %9, %c421_i32_5 : i32
    %true = arith.constant true
    %11 = arith.xori %10, %true : i1
    %12 = arith.extui %11 : i1 to i32
    %c0_i32_6 = arith.constant 0 : i32
    %13 = arith.cmpi ne, %12, %c0_i32_6 : i32
    scf.if %13 {
      %16 = vector.broadcast %4 : vector<1x421xi32> to vector<15x421xi32>
      %17 = arith.cmpi eq, %5, %16 : vector<15x421xi32>
      %cst = arith.constant 1.000000e+00 : f32
      %cst_8 = arith.constant 0.000000e+00 : f32
      %18 = vector.broadcast %cst : f32 to vector<15x421xf32>
      %19 = vector.broadcast %cst_8 : f32 to vector<15x421xf32>
      %20 = arith.select %17, %18, %19 : vector<15x421xi1>, vector<15x421xf32>
      %c0_9 = arith.constant 0 : index
      %c0_10 = arith.constant 0 : index
      %c0_11 = arith.constant 0 : index
      %21 = vector.load %arg4[%c0_9, %c0_10, %c0_11] : memref<1x15x1xf32, #tpu.memory_space<vmem>>, vector<1x15x1xf32>
      %cst_12 = arith.constant dense<0.000000e+00> : vector<15xf32>
      %22 = vector.multi_reduction <add>, %3, %cst_12 [1] : vector<15x421xf32> to vector<15xf32>
      %23 = vector.shape_cast %22 : vector<15xf32> to vector<15x1xf32>
      %24 = vector.shape_cast %23 : vector<15x1xf32> to vector<1x15x1xf32>
      %25 = arith.addf %21, %24 : vector<1x15x1xf32>
      %c0_13 = arith.constant 0 : index
      %c0_14 = arith.constant 0 : index
      %c0_15 = arith.constant 0 : index
      %26 = vector.load %arg4[%c0_13, %c0_14, %c0_15] : memref<1x15x1xf32, #tpu.memory_space<vmem>>, vector<1x15x1xf32>
      tpu.vector_store %arg4[%c0_13, %c0_14, %c0_15], %25 {strides = array<i32>} : memref<1x15x1xf32, #tpu.memory_space<vmem>>, vector<1x15x1xf32>,
      %c0_16 = arith.constant 0 : index
      %c0_17 = arith.constant 0 : index
      %c0_18 = arith.constant 0 : index
      %27 = vector.load %arg5[%c0_16, %c0_17, %c0_18] : memref<1x15x1xf32, #tpu.memory_space<vmem>>, vector<1x15x1xf32>
      %cst_19 = arith.constant dense<0.000000e+00> : vector<15xf32>
      %28 = vector.multi_reduction <add>, %20, %cst_19 [1] : vector<15x421xf32> to vector<15xf32>
      %29 = vector.shape_cast %28 : vector<15xf32> to vector<15x1xf32>
      %30 = vector.shape_cast %29 : vector<15x1xf32> to vector<1x15x1xf32>
      %31 = arith.addf %27, %30 : vector<1x15x1xf32>
      %c0_20 = arith.constant 0 : index
      %c0_21 = arith.constant 0 : index
      %c0_22 = arith.constant 0 : index
      %32 = vector.load %arg5[%c0_20, %c0_21, %c0_22] : memref<1x15x1xf32, #tpu.memory_space<vmem>>, vector<1x15x1xf32>
      tpu.vector_store %arg5[%c0_20, %c0_21, %c0_22], %31 {strides = array<i32>} : memref<1x15x1xf32, #tpu.memory_space<vmem>>, vector<1x15x1xf32>,
      %c0_23 = arith.constant 0 : index
      %c0_24 = arith.constant 0 : index
      %c0_25 = arith.constant 0 : index
      %33 = vector.load %arg6[%c0_23, %c0_24, %c0_25] : memref<1x15x1xf32, #tpu.memory_space<vmem>>, vector<1x15x1xf32>
      %cst_26 = arith.constant 0.000000e+00 : f32
      %34 = vector.broadcast %cst_26 : f32 to vector<15x421xf32>
      %35 = arith.select %17, %3, %34 : vector<15x421xi1>, vector<15x421xf32>
      %cst_27 = arith.constant dense<0.000000e+00> : vector<15xf32>
      %36 = vector.multi_reduction <add>, %35, %cst_27 [1] : vector<15x421xf32> to vector<15xf32>
      %37 = vector.shape_cast %36 : vector<15xf32> to vector<15x1xf32>
      %38 = vector.shape_cast %37 : vector<15x1xf32> to vector<1x15x1xf32>
      %39 = arith.addf %33, %38 : vector<1x15x1xf32>
      %c0_28 = arith.constant 0 : index
      %c0_29 = arith.constant 0 : index
      %c0_30 = arith.constant 0 : index
      %40 = vector.load %arg6[%c0_28, %c0_29, %c0_30] : memref<1x15x1xf32, #tpu.memory_space<vmem>>, vector<1x15x1xf32>
      tpu.vector_store %arg6[%c0_28, %c0_29, %c0_30], %39 {strides = array<i32>} : memref<1x15x1xf32, #tpu.memory_space<vmem>>, vector<1x15x1xf32>,
    } else {
    }
    %14 = arith.extui %10 : i1 to i32
    %c0_i32_7 = arith.constant 0 : i32
    %15 = arith.cmpi ne, %14, %c0_i32_7 : i32
    scf.if %15 {
      %16 = tpu.iota {dimensions = array<i32: 1>} : vector<1x421xi32>
      %17 = vector.broadcast %8 : i32 to vector<1x421xi32>
      %18 = arith.addi %16, %17 : vector<1x421xi32>
      %c421_i32_8 = arith.constant 421 : i32
      %19 = vector.broadcast %c421_i32_8 : i32 to vector<1x421xi32>
      %20 = arith.cmpi slt, %18, %19 : vector<1x421xi32>
      %21 = vector.broadcast %4 : vector<1x421xi32> to vector<15x421xi32>
      %22 = arith.cmpi eq, %5, %21 : vector<15x421xi32>
      %23 = vector.broadcast %20 : vector<1x421xi1> to vector<15x421xi1>
      %24 = arith.andi %22, %23 : vector<15x421xi1>
      %cst = arith.constant 0.000000e+00 : f32
      %25 = vector.shape_cast %20 : vector<1x421xi1> to vector<1x421xi1>
      %26 = vector.broadcast %25 : vector<1x421xi1> to vector<15x421xi1>
      %27 = vector.broadcast %cst : f32 to vector<15x421xf32>
      %28 = arith.select %26, %3, %27 : vector<15x421xi1>, vector<15x421xf32>
      %cst_9 = arith.constant 1.000000e+00 : f32
      %cst_10 = arith.constant 0.000000e+00 : f32
      %29 = vector.broadcast %cst_9 : f32 to vector<15x421xf32>
      %30 = vector.broadcast %cst_10 : f32 to vector<15x421xf32>
      %31 = arith.select %24, %29, %30 : vector<15x421xi1>, vector<15x421xf32>
      %c0_11 = arith.constant 0 : index
      %c0_12 = arith.constant 0 : index
      %c0_13 = arith.constant 0 : index
      %32 = vector.load %arg4[%c0_11, %c0_12, %c0_13] : memref<1x15x1xf32, #tpu.memory_space<vmem>>, vector<1x15x1xf32>
      %cst_14 = arith.constant dense<0.000000e+00> : vector<15xf32>
      %33 = vector.multi_reduction <add>, %28, %cst_14 [1] : vector<15x421xf32> to vector<15xf32>
      %34 = vector.shape_cast %33 : vector<15xf32> to vector<15x1xf32>
      %35 = vector.shape_cast %34 : vector<15x1xf32> to vector<1x15x1xf32>
      %36 = arith.addf %32, %35 : vector<1x15x1xf32>
      %c0_15 = arith.constant 0 : index
      %c0_16 = arith.constant 0 : index
      %c0_17 = arith.constant 0 : index
      %37 = vector.load %arg4[%c0_15, %c0_16, %c0_17] : memref<1x15x1xf32, #tpu.memory_space<vmem>>, vector<1x15x1xf32>
      tpu.vector_store %arg4[%c0_15, %c0_16, %c0_17], %36 {strides = array<i32>} : memref<1x15x1xf32, #tpu.memory_space<vmem>>, vector<1x15x1xf32>,
      %c0_18 = arith.constant 0 : index
      %c0_19 = arith.constant 0 : index
      %c0_20 = arith.constant 0 : index
      %38 = vector.load %arg5[%c0_18, %c0_19, %c0_20] : memref<1x15x1xf32, #tpu.memory_space<vmem>>, vector<1x15x1xf32>
      %cst_21 = arith.constant dense<0.000000e+00> : vector<15xf32>
      %39 = vector.multi_reduction <add>, %31, %cst_21 [1] : vector<15x421xf32> to vector<15xf32>
      %40 = vector.shape_cast %39 : vector<15xf32> to vector<15x1xf32>
      %41 = vector.shape_cast %40 : vector<15x1xf32> to vector<1x15x1xf32>
      %42 = arith.addf %38, %41 : vector<1x15x1xf32>
      %c0_22 = arith.constant 0 : index
      %c0_23 = arith.constant 0 : index
      %c0_24 = arith.constant 0 : index
      %43 = vector.load %arg5[%c0_22, %c0_23, %c0_24] : memref<1x15x1xf32, #tpu.memory_space<vmem>>, vector<1x15x1xf32>
      tpu.vector_store %arg5[%c0_22, %c0_23, %c0_24], %42 {strides = array<i32>} : memref<1x15x1xf32, #tpu.memory_space<vmem>>, vector<1x15x1xf32>,
      %c0_25 = arith.constant 0 : index
      %c0_26 = arith.constant 0 : index
      %c0_27 = arith.constant 0 : index
      %44 = vector.load %arg6[%c0_25, %c0_26, %c0_27] : memref<1x15x1xf32, #tpu.memory_space<vmem>>, vector<1x15x1xf32>
      %cst_28 = arith.constant 0.000000e+00 : f32
      %45 = vector.broadcast %cst_28 : f32 to vector<15x421xf32>
      %46 = arith.select %24, %28, %45 : vector<15x421xi1>, vector<15x421xf32>
      %cst_29 = arith.constant dense<0.000000e+00> : vector<15xf32>
      %47 = vector.multi_reduction <add>, %46, %cst_29 [1] : vector<15x421xf32> to vector<15xf32>
      %48 = vector.shape_cast %47 : vector<15xf32> to vector<15x1xf32>
      %49 = vector.shape_cast %48 : vector<15x1xf32> to vector<1x15x1xf32>
      %50 = arith.addf %44, %49 : vector<1x15x1xf32>
      %c0_30 = arith.constant 0 : index
      %c0_31 = arith.constant 0 : index
      %c0_32 = arith.constant 0 : index
      %51 = vector.load %arg6[%c0_30, %c0_31, %c0_32] : memref<1x15x1xf32, #tpu.memory_space<vmem>>, vector<1x15x1xf32>
      tpu.vector_store %arg6[%c0_30, %c0_31, %c0_32], %50 {strides = array<i32>} : memref<1x15x1xf32, #tpu.memory_space<vmem>>, vector<1x15x1xf32>,
    } else {
    }
    return
  }
  func.func @transform_0(%arg0: i32, %arg1: i32) -> (i32, i32) {
    %c1_i32 = arith.constant 1 : i32
    %0 = arith.muli %arg0, %c1_i32 : i32
    %1 = arith.addi %0, %arg1 : i32
    %c0_i32 = arith.constant 0 : i32
    %c0_i32_0 = arith.constant 0 : i32
    return %c0_i32, %1 : i32, i32
  }
  func.func @transform_1(%arg0: i32, %arg1: i32) -> (i32, i32) {
    %c1_i32 = arith.constant 1 : i32
    %0 = arith.muli %arg0, %c1_i32 : i32
    %1 = arith.addi %0, %arg1 : i32
    %c0_i32 = arith.constant 0 : i32
    %c0_i32_0 = arith.constant 0 : i32
    return %c0_i32, %1 : i32, i32
  }
  func.func @transform_2(%arg0: i32, %arg1: i32) -> (i32, i32, i32) {
    %c0_i32 = arith.constant 0 : i32
    %c0_i32_0 = arith.constant 0 : i32
    %c0_i32_1 = arith.constant 0 : i32
    return %arg0, %c0_i32, %c0_i32_0 : i32, i32, i32
  }
  func.func @transform_3(%arg0: i32, %arg1: i32) -> (i32, i32, i32) {
    %c0_i32 = arith.constant 0 : i32
    %c0_i32_0 = arith.constant 0 : i32
    %c0_i32_1 = arith.constant 0 : i32
    return %arg0, %c0_i32, %c0_i32_0 : i32, i32, i32
  }
  func.func @transform_4(%arg0: i32, %arg1: i32) -> (i32, i32, i32) {
    %c0_i32 = arith.constant 0 : i32
    %c0_i32_0 = arith.constant 0 : i32
    %c0_i32_1 = arith.constant 0 : i32
    return %arg0, %c0_i32, %c0_i32_0 : i32, i32, i32
  }
}

</mosaic_0001>

<llo_original>
// kernel: dice_loss_cn.1
$region0: #{dice_loss_cn.1}
  #allocation0 [shape = 'u32[]', space=smem, size = 0x4, offset = 0x4, fixed_abs, tag = 'smem constant byte address 0x4 - core index']
  #allocation1 [shape = 'u32[144,128]{1,0:T(1,128)}', space=vmem, size = 0x12000, scoped, tag = 'internal scratch']
  %s0 = inlined_call_operand.hbm [shape: f32[15,421], index: 0, kind: input, shape index: {}]
  %s1 = inlined_call_operand.hbm [shape: s32[1,421], index: 1, kind: input, shape index: {}]
  %s2 = inlined_call_operand.vmem [shape: f32[1,15,1], index: 2, kind: output, shape index: {0}]
  %s3 = inlined_call_operand.vmem [shape: f32[1,15,1], index: 3, kind: output, shape index: {1}]
  %s4 = inlined_call_operand.vmem [shape: f32[1,15,1], index: 4, kind: output, shape index: {2}]
  %5 = xla_tuple %s2, %s3, %s4
  %s6 = sld [smem:[#allocation0]]
  $region54: #{dice_loss_cn.1} parent=0
    _
  %s8 = ssub.s32 1, %s6
  %s9 = scalar_select 0, %s8, %s6
  $region1: #{dice_loss_cn.1} parent=0
    #allocation2 [shape = 'u8[32768]{0}', space=vmem, size = 0x8000, scoped, tag = 'input window, operand 0, single buffered']
    #allocation3 [shape = 's32[1]{0}', space=sflag, size = 0x4, scoped, tag = 'scoped memory for dice_loss_cn.1']
    #allocation4 [shape = 'u8[2048]{0}', space=vmem, size = 0x800, scoped, tag = 'input window, operand 1, single buffered']
    #allocation5 [shape = 's32[1]{0}', space=sflag, size = 0x4, scoped, tag = 'scoped memory for dice_loss_cn.1']
    %10 = vsyncpa [#allocation3], 0
    %11 = vsyncpa [#allocation5], 0
    // Predicated region
    $region2: #{dice_loss_cn.1} parent=1 // pred_check
      _
    $region3: #{dice_loss_cn.1} parent=1 // pred_check_branch
      %13 = sbr.rel (0) target = $region5
    $region4: #{dice_loss_cn.1} parent=1 // pred_region
      %s14 = sadd.s32 0, 0
      %s15 = smul.u32 4, %s14
      %s17 = ssub.s32 1024, 1024
      %18 = vsyncadd [#allocation3], %s17
      %s19 = smul.addr %s15, 128
      %s20 = scalar_lea.hbm %s0, %s19
      %s21 = sshll.u32 [#allocation2], 4
      %s22 = int_to_ptr.vmem [resolvable:$true] %s21
      %27 = dma.hbm_to_vmem [thread:$0]  %s20, 1024, %s22, [#allocation3], 512, 512, 32
    $region5: #{dice_loss_cn.1} parent=1 // pred_fallthru
      _
    // Predicated region
    $region6: #{dice_loss_cn.1} parent=1 // pred_check
      _
    $region7: #{dice_loss_cn.1} parent=1 // pred_check_branch
      %29 = sbr.rel (0) target = $region9
    $region8: #{dice_loss_cn.1} parent=1 // pred_region
      %s30 = sadd.s32 0, 0
      %s31 = smul.u32 4, %s30
      %s33 = ssub.s32 64, 64
      %34 = vsyncadd [#allocation5], %s33
      %s35 = smul.addr %s31, 16
      %s36 = scalar_lea.hbm %s1, %s35
      %s38 = sshll.u32 [#allocation4], 4
      %s39 = int_to_ptr.vmem [resolvable:$true] %s38
      %41 = dma.hbm_to_vmem [thread:$0]  %s36, 64, %s39, [#allocation5]
    $region9: #{dice_loss_cn.1} parent=1 // pred_fallthru
      _
    // Predicated region
    $region10: #{dice_loss_cn.1} parent=1 // pred_check
      _
    $region11: #{dice_loss_cn.1} parent=1 // pred_check_branch
      %43 = sbr.rel (0) target = $region13
    $region12: #{dice_loss_cn.1} parent=1 // pred_region
      %44 = dma.done [#allocation3], 1024
    $region13: #{dice_loss_cn.1} parent=1 // pred_fallthru
      _
    // Predicated region
    $region14: #{dice_loss_cn.1} parent=1 // pred_check
      _
    $region15: #{dice_loss_cn.1} parent=1 // pred_check_branch
      %46 = sbr.rel (0) target = $region17
    $region16: #{dice_loss_cn.1} parent=1 // pred_region
      %47 = dma.done [#allocation5], 64
    $region17: #{dice_loss_cn.1} parent=1 // pred_fallthru
      _
    %s48 = sadd.s32 0, 0
    %s49 = smul.u32 4, %s48
    %s50 = sadd.s32 0, 0
    %s51 = smul.u32 4, %s50
    %p52 = scmp.eq.s32.totalorder 0, 0
    // Predicated region
    $region18: #{dice_loss_cn.1} parent=1 // pred_check
      %p53 = pneg %p52
    $region19: #{dice_loss_cn.1} parent=1 // pred_check_branch
      %55 = sbr.rel (%p53) target = $region21
    $region20: #{dice_loss_cn.1} parent=1 // pred_region
      %vm56 = vcmask 7168
      %57 = vst.msk [vmem:[%s2] sm:$0xff] %vm56, 0.0
      %vm58 = vcmask 6144
      %59 = vst.msk [vmem:[%s2 + $0x8] sm:$0x7f] %vm58, 0.0
      %60 = vst.msk [vmem:[%s3] sm:$0xff] %vm56, 0.0
      %61 = vst.msk [vmem:[%s3 + $0x8] sm:$0x7f] %vm58, 0.0
      %62 = vst.msk [vmem:[%s4] sm:$0xff] %vm56, 0.0
      %63 = vst.msk [vmem:[%s4 + $0x8] sm:$0x7f] %vm58, 0.0
    $region21: #{dice_loss_cn.1} parent=1 // pred_fallthru
      _
    %v64 = vld [vmem:[#allocation2] sm:$0xff]
    %v65 = vld [vmem:[#allocation2 + $0x8] sm:$0xff]
    %v66 = vld [vmem:[#allocation2 + $0x10] sm:$0xff]
    %v67 = vld [vmem:[#allocation2 + $0x18] sm:$0xff]
    %v68 = vld [vmem:[#allocation2 + $0x20] sm:$0x7f]
    %v69 = vld [vmem:[#allocation2 + $0x28] sm:$0x7f]
    %v70 = vld [vmem:[#allocation2 + $0x30] sm:$0x7f]
    %v71 = vld [vmem:[#allocation2 + $0x38] sm:$0x7f]
    %v72 = vld [vmem:[#allocation4] sm:$0xf]
    %v73 = vlaneseq
    %v74 = vshrl.u32 %v73, 7
    %v75 = vadd.s32 %v74, 8
    %s76 = sadd.s32 0, 0
    %s77 = smul.u32 %s76, 421
    %s78 = sadd.s32 %s77, 421
    %p79 = scmp.gt.s32.totalorder %s78, 421
    %p80 = scmp.le.s32.totalorder %s78, 421
    // Predicated region
    $region22: #{dice_loss_cn.1} parent=1 // pred_check
      %p81 = pneg %p80
    $region23: #{dice_loss_cn.1} parent=1 // pred_check_branch
      %83 = sbr.rel (%p81) target = $region25
    $region24: #{dice_loss_cn.1} parent=1 // pred_region
      %v84 = vlaneseq
      %v85 = vshrl.u32 %v84, 7
      %v86 = vsub.s32 0, %v85
      %v87 = vrot.slane %v72, %v86
      %v88 = vlaneseq
      %v89 = vshrl.u32 %v88, 7
      %v90 = vsub.s32 1, %v89
      %v91 = vrot.slane %v72, %v90
      %v92 = vlaneseq
      %v93 = vshrl.u32 %v92, 7
      %v94 = vsub.s32 2, %v93
      %v95 = vrot.slane %v72, %v94
      %v96 = vlaneseq
      %v97 = vshrl.u32 %v96, 7
      %v98 = vsub.s32 3, %v97
      %v99 = vrot.slane %v72, %v98
      %vm100 = vcmp.eq.s32.totalorder %v74, %v87
      %vm101 = vcmp.eq.s32.totalorder %v74, %v91
      %vm102 = vcmp.eq.s32.totalorder %v74, %v95
      %vm103 = vcmp.eq.s32.totalorder %v74, %v99
      %vm104 = vcmp.eq.s32.totalorder %v75, %v87
      %vm105 = vcmp.eq.s32.totalorder %v75, %v91
      %vm106 = vcmp.eq.s32.totalorder %v75, %v95
      %vm107 = vcmp.eq.s32.totalorder %v75, %v99
      %v108 = vsel %vm100, 1.0, 0.0
      %v109 = vsel %vm101, 1.0, 0.0
      %v110 = vsel %vm102, 1.0, 0.0
      %v111 = vsel %vm103, 1.0, 0.0
      %v112 = vsel %vm104, 1.0, 0.0
      %v113 = vsel %vm105, 1.0, 0.0
      %v114 = vsel %vm106, 1.0, 0.0
      %v115 = vsel %vm107, 1.0, 0.0
      %v116 = vld [vmem:[%s2] sm:$0xff]
      %v117 = vld [vmem:[%s2 + $0x8] sm:$0x7f]
      %v118 = vadd.f32 %v64, %v65
      %v119 = vadd.f32 %v118, %v66
      %vm120 = vcmask 302080
      %v121 = vsel %vm120, %v67, 0.0
      %v122 = vadd.f32 %v119, %v121
      %123 = vadd.xlane.f32.xlu0 %v122
      %v124 = vpop.xlane.xlu0 %123
      %vm125 = vcmask 1046528
      %v126 = vsel %vm125, %v68, 0.0
      %v127 = vsel %vm125, %v69, 0.0
      %v128 = vadd.f32 %v126, %v127
      %v129 = vsel %vm125, %v70, 0.0
      %v130 = vadd.f32 %v128, %v129
      %vm131 = vcmask 301056
      %v132 = vsel %vm131, %v71, 0.0
      %v133 = vadd.f32 %v130, %v132
      %134 = vadd.xlane.f32.xlu0 %v133
      %v135 = vpop.xlane.xlu0 %134
      %v136 = vadd.f32 %v116, %v124
      %v137 = vadd.f32 %v117, %v135
      %vm138 = vcmask 7168
      %139 = vst.msk [vmem:[%s2] sm:$0xff] %vm138, %v136
      %vm140 = vcmask 6144
      %141 = vst.msk [vmem:[%s2 + $0x8] sm:$0x7f] %vm140, %v137
      %v142 = vld [vmem:[%s3] sm:$0xff]
      %v143 = vld [vmem:[%s3 + $0x8] sm:$0x7f]
      %v144 = vadd.f32 %v108, %v109
      %v145 = vadd.f32 %v144, %v110
      %v146 = vsel %vm120, %v111, 0.0
      %v147 = vadd.f32 %v145, %v146
      %148 = vadd.xlane.f32.xlu0 %v147
      %v149 = vpop.xlane.xlu0 %148
      %v150 = vsel %vm125, %v112, 0.0
      %v151 = vsel %vm125, %v113, 0.0
      %v152 = vadd.f32 %v150, %v151
      %v153 = vsel %vm125, %v114, 0.0
      %v154 = vadd.f32 %v152, %v153
      %v155 = vsel %vm131, %v115, 0.0
      %v156 = vadd.f32 %v154, %v155
      %157 = vadd.xlane.f32.xlu0 %v156
      %v158 = vpop.xlane.xlu0 %157
      %v159 = vadd.f32 %v142, %v149
      %v160 = vadd.f32 %v143, %v158
      %161 = vst.msk [vmem:[%s3] sm:$0xff] %vm138, %v159
      %162 = vst.msk [vmem:[%s3 + $0x8] sm:$0x7f] %vm140, %v160
      %v163 = vld [vmem:[%s4] sm:$0xff]
      %v164 = vld [vmem:[%s4 + $0x8] sm:$0x7f]
      %v165 = vsel %vm100, %v64, 0.0
      %v166 = vsel %vm101, %v65, 0.0
      %v167 = vsel %vm102, %v66, 0.0
      %v168 = vsel %vm103, %v67, 0.0
      %v169 = vsel %vm104, %v68, 0.0
      %v170 = vsel %vm105, %v69, 0.0
      %v171 = vsel %vm106, %v70, 0.0
      %v172 = vsel %vm107, %v71, 0.0
      %v173 = vadd.f32 %v165, %v166
      %v174 = vadd.f32 %v173, %v167
      %v175 = vsel %vm120, %v168, 0.0
      %v176 = vadd.f32 %v174, %v175
      %177 = vadd.xlane.f32.xlu0 %v176
      %v178 = vpop.xlane.xlu0 %177
      %v179 = vsel %vm125, %v169, 0.0
      %v180 = vsel %vm125, %v170, 0.0
      %v181 = vadd.f32 %v179, %v180
      %v182 = vsel %vm125, %v171, 0.0
      %v183 = vadd.f32 %v181, %v182
      %v184 = vsel %vm131, %v172, 0.0
      %v185 = vadd.f32 %v183, %v184
      %186 = vadd.xlane.f32.xlu0 %v185
      %v187 = vpop.xlane.xlu0 %186
      %v188 = vadd.f32 %v163, %v178
      %v189 = vadd.f32 %v164, %v187
      %190 = vst.msk [vmem:[%s4] sm:$0xff] %vm138, %v188
      %191 = vst.msk [vmem:[%s4 + $0x8] sm:$0x7f] %vm140, %v189
    $region25: #{dice_loss_cn.1} parent=1 // pred_fallthru
      _
    // Predicated region
    $region26: #{dice_loss_cn.1} parent=1 // pred_check
      %p192 = pneg %p79
    $region27: #{dice_loss_cn.1} parent=1 // pred_check_branch
      %194 = sbr.rel (%p192) target = $region29
    $region28: #{dice_loss_cn.1} parent=1 // pred_region
      %v195 = vlaneseq
      %v196 = vand.u32 %v195, 127
      %v197 = vadd.s32 %v196, 128
      %v198 = vadd.s32 %v196, 256
      %v199 = vadd.s32 %v196, 384
      %v200 = vstv %s77
      %v201 = vadd.s32 %v196, %v200
      %v202 = vadd.s32 %v197, %v200
      %v203 = vadd.s32 %v198, %v200
      %v204 = vadd.s32 %v199, %v200
      %vm205 = vcmp.lt.s32.totalorder %v201, 421
      %vm206 = vcmp.lt.s32.totalorder %v202, 421
      %vm207 = vcmp.lt.s32.totalorder %v203, 421
      %vm208 = vcmp.lt.s32.totalorder %v204, 421
      %v209 = vlaneseq
      %v210 = vshrl.u32 %v209, 7
      %v211 = vsub.s32 0, %v210
      %v212 = vrot.slane %v72, %v211
      %v213 = vlaneseq
      %v214 = vshrl.u32 %v213, 7
      %v215 = vsub.s32 1, %v214
      %v216 = vrot.slane %v72, %v215
      %v217 = vlaneseq
      %v218 = vshrl.u32 %v217, 7
      %v219 = vsub.s32 2, %v218
      %v220 = vrot.slane %v72, %v219
      %v221 = vlaneseq
      %v222 = vshrl.u32 %v221, 7
      %v223 = vsub.s32 3, %v222
      %v224 = vrot.slane %v72, %v223
      %vm225 = vcmp.eq.s32.totalorder %v74, %v212
      %vm226 = vcmp.eq.s32.totalorder %v74, %v216
      %vm227 = vcmp.eq.s32.totalorder %v74, %v220
      %vm228 = vcmp.eq.s32.totalorder %v74, %v224
      %vm229 = vcmp.eq.s32.totalorder %v75, %v212
      %vm230 = vcmp.eq.s32.totalorder %v75, %v216
      %vm231 = vcmp.eq.s32.totalorder %v75, %v220
      %vm232 = vcmp.eq.s32.totalorder %v75, %v224
      %v233 = vsel %vm205, 1, 0
      %v234 = vsel %vm206, 1, 0
      %v235 = vsel %vm207, 1, 0
      %v236 = vsel %vm208, 1, 0
      %vm237 = vcmp.eq.s32.totalorder %v233, 1
      %vm238 = vcmp.eq.s32.totalorder %v234, 1
      %vm239 = vcmp.eq.s32.totalorder %v235, 1
      %vm240 = vcmp.eq.s32.totalorder %v236, 1
      %vm241 = vmand %vm225, %vm237
      %vm242 = vmand %vm226, %vm238
      %vm243 = vmand %vm227, %vm239
      %vm244 = vmand %vm228, %vm240
      %vm245 = vmand %vm229, %vm237
      %vm246 = vmand %vm230, %vm238
      %vm247 = vmand %vm231, %vm239
      %vm248 = vmand %vm232, %vm240
      %v249 = vsel %vm237, %v64, 0.0
      %v250 = vsel %vm238, %v65, 0.0
      %v251 = vsel %vm239, %v66, 0.0
      %v252 = vsel %vm240, %v67, 0.0
      %v253 = vsel %vm237, %v68, 0.0
      %v254 = vsel %vm238, %v69, 0.0
      %v255 = vsel %vm239, %v70, 0.0
      %v256 = vsel %vm240, %v71, 0.0
      %v257 = vsel %vm241, 1.0, 0.0
      %v258 = vsel %vm242, 1.0, 0.0
      %v259 = vsel %vm243, 1.0, 0.0
      %v260 = vsel %vm244, 1.0, 0.0
      %v261 = vsel %vm245, 1.0, 0.0
      %v262 = vsel %vm246, 1.0, 0.0
      %v263 = vsel %vm247, 1.0, 0.0
      %v264 = vsel %vm248, 1.0, 0.0
      %v265 = vld [vmem:[%s2] sm:$0xff]
      %v266 = vld [vmem:[%s2 + $0x8] sm:$0x7f]
      %v267 = vadd.f32 %v249, %v250
      %v268 = vadd.f32 %v267, %v251
      %vm269 = vcmask 302080
      %v270 = vsel %vm269, %v252, 0.0
      %v271 = vadd.f32 %v268, %v270
      %272 = vadd.xlane.f32.xlu0 %v271
      %v273 = vpop.xlane.xlu0 %272
      %vm274 = vcmask 1046528
      %v275 = vsel %vm274, %v253, 0.0
      %v276 = vsel %vm274, %v254, 0.0
      %v277 = vadd.f32 %v275, %v276
      %v278 = vsel %vm274, %v255, 0.0
      %v279 = vadd.f32 %v277, %v278
      %vm280 = vcmask 301056
      %v281 = vsel %vm280, %v256, 0.0
      %v282 = vadd.f32 %v279, %v281
      %283 = vadd.xlane.f32.xlu0 %v282
      %v284 = vpop.xlane.xlu0 %283
      %v285 = vadd.f32 %v265, %v273
      %v286 = vadd.f32 %v266, %v284
      %vm287 = vcmask 7168
      %288 = vst.msk [vmem:[%s2] sm:$0xff] %vm287, %v285
      %vm289 = vcmask 6144
      %290 = vst.msk [vmem:[%s2 + $0x8] sm:$0x7f] %vm289, %v286
      %v291 = vld [vmem:[%s3] sm:$0xff]
      %v292 = vld [vmem:[%s3 + $0x8] sm:$0x7f]
      %v293 = vadd.f32 %v257, %v258
      %v294 = vadd.f32 %v293, %v259
      %v295 = vsel %vm269, %v260, 0.0
      %v296 = vadd.f32 %v294, %v295
      %297 = vadd.xlane.f32.xlu0 %v296
      %v298 = vpop.xlane.xlu0 %297
      %v299 = vsel %vm274, %v261, 0.0
      %v300 = vsel %vm274, %v262, 0.0
      %v301 = vadd.f32 %v299, %v300
      %v302 = vsel %vm274, %v263, 0.0
      %v303 = vadd.f32 %v301, %v302
      %v304 = vsel %vm280, %v264, 0.0
      %v305 = vadd.f32 %v303, %v304
      %306 = vadd.xlane.f32.xlu0 %v305
      %v307 = vpop.xlane.xlu0 %306
      %v308 = vadd.f32 %v291, %v298
      %v309 = vadd.f32 %v292, %v307
      %310 = vst.msk [vmem:[%s3] sm:$0xff] %vm287, %v308
      %311 = vst.msk [vmem:[%s3 + $0x8] sm:$0x7f] %vm289, %v309
      %v312 = vld [vmem:[%s4] sm:$0xff]
      %v313 = vld [vmem:[%s4 + $0x8] sm:$0x7f]
      %v314 = vsel %vm241, %v249, 0.0
      %v315 = vsel %vm242, %v250, 0.0
      %v316 = vsel %vm243, %v251, 0.0
      %v317 = vsel %vm244, %v252, 0.0
      %v318 = vsel %vm245, %v253, 0.0
      %v319 = vsel %vm246, %v254, 0.0
      %v320 = vsel %vm247, %v255, 0.0
      %v321 = vsel %vm248, %v256, 0.0
      %v322 = vadd.f32 %v314, %v315
      %v323 = vadd.f32 %v322, %v316
      %v324 = vsel %vm269, %v317, 0.0
      %v325 = vadd.f32 %v323, %v324
      %326 = vadd.xlane.f32.xlu0 %v325
      %v327 = vpop.xlane.xlu0 %326
      %v328 = vsel %vm274, %v318, 0.0
      %v329 = vsel %vm274, %v319, 0.0
      %v330 = vadd.f32 %v328, %v329
      %v331 = vsel %vm274, %v320, 0.0
      %v332 = vadd.f32 %v330, %v331
      %v333 = vsel %vm280, %v321, 0.0
      %v334 = vadd.f32 %v332, %v333
      %335 = vadd.xlane.f32.xlu0 %v334
      %v336 = vpop.xlane.xlu0 %335
      %v337 = vadd.f32 %v312, %v327
      %v338 = vadd.f32 %v313, %v336
      %339 = vst.msk [vmem:[%s4] sm:$0xff] %vm287, %v337
      %340 = vst.msk [vmem:[%s4 + $0x8] sm:$0x7f] %vm289, %v338
    $region29: #{dice_loss_cn.1} parent=1 // pred_fallthru
      _
    // Predicated region
    $region30: #{dice_loss_cn.1} parent=1 // pred_check
      _
    $region31: #{dice_loss_cn.1} parent=1 // pred_check_branch
      %342 = sbr.rel (0) target = $region33
    $region32: #{dice_loss_cn.1} parent=1 // pred_region
      _
    $region33: #{dice_loss_cn.1} parent=1 // pred_fallthru
      _
    // Predicated region
    $region34: #{dice_loss_cn.1} parent=1 // pred_check
      _
    $region35: #{dice_loss_cn.1} parent=1 // pred_check_branch
      %344 = sbr.rel (0) target = $region37
    $region36: #{dice_loss_cn.1} parent=1 // pred_region
      _
    $region37: #{dice_loss_cn.1} parent=1 // pred_fallthru
      _
    // Predicated region
    $region38: #{dice_loss_cn.1} parent=1 // pred_check
      _
    $region39: #{dice_loss_cn.1} parent=1 // pred_check_branch
      %346 = sbr.rel (0) target = $region41
    $region40: #{dice_loss_cn.1} parent=1 // pred_region
      _
    $region41: #{dice_loss_cn.1} parent=1 // pred_fallthru
      _
    // Predicated region
    $region42: #{dice_loss_cn.1} parent=1 // pred_check
      _
    $region43: #{dice_loss_cn.1} parent=1 // pred_check_branch
      %348 = sbr.rel (0) target = $region45
    $region44: #{dice_loss_cn.1} parent=1 // pred_region
      _
    $region45: #{dice_loss_cn.1} parent=1 // pred_fallthru
      _
    // Predicated region
    $region46: #{dice_loss_cn.1} parent=1 // pred_check
      _
    $region47: #{dice_loss_cn.1} parent=1 // pred_check_branch
      %350 = sbr.rel (0) target = $region49
    $region48: #{dice_loss_cn.1} parent=1 // pred_region
      _
    $region49: #{dice_loss_cn.1} parent=1 // pred_fallthru
      _
    // Predicated region
    $region50: #{dice_loss_cn.1} parent=1 // pred_check
      _
    $region51: #{dice_loss_cn.1} parent=1 // pred_check_branch
      %352 = sbr.rel (0) target = $region53
    $region52: #{dice_loss_cn.1} parent=1 // pred_region
      _
    $region53: #{dice_loss_cn.1} parent=1 // pred_fallthru
      _
    %353 = vsyncpa [#allocation3], 1
    %354 = vsyncpa [#allocation5], 1

</llo_original>
